<compile_context>
chip_gen: v5e
topology: v5e:2x2
jax: 0.10.0
libtpu: 0.0.40
codegen_flags: <defaults>
</compile_context>

<pallas_src>
import jax
import jax.numpy as jnp
from jax.experimental import pallas as pl
from jax.experimental.pallas import tpu as pltpu


def _implicit_a_kernel(bias_ref, x_ref, o_ref):
    # bias_ref: (tile_r, 1); x_ref / o_ref: (tile_r, tile_hw)
    # Single VPU add in the I/O dtype; bias lane-broadcasts over tile_hw.
    o_ref[...] = x_ref[...] + bias_ref[...]


_BLOCK_BYTES_TARGET = 4 << 20    # ~4 MiB per block -> big DMAs, few grid steps
_VMEM_LIMIT_BYTES = 32 << 20     # >= double-buffered footprint; safe on v5e/v6e/v7x


def _sublane_align(dtype) -> int:
    # Sub-32-bit dtypes pack along sublanes: one vreg holds 8 f32 rows,
    # 16 bf16 rows, 32 int8/fp8 rows.
    itemsize = jnp.dtype(dtype).itemsize
    return max(8, 32 // max(itemsize, 1))


def _pick_tiles(rows, hw, itemsize, align):
    """Pick (tile_r, tile_hw) targeting ~_BLOCK_BYTES_TARGET per block.

    Each tile dim is either a multiple of its hardware alignment (align / 128)
    or the full array dim, so the (8, 128) BlockSpec rule holds for any shape.
    Boundary blocks of the cdiv grid are masked by Pallas, so the tiles never
    have to divide the array -- no full-dimension fallback can blow VMEM.
    """
    # Lane (last) dim first: as wide as the budget allows for `align` rows.
    max_hw = max(128, (_BLOCK_BYTES_TARGET // (align * itemsize)) // 128 * 128)
    tile_hw = hw if hw <= max_hw else max_hw
    # Fill the remaining block budget with rows (sublane dim).
    rows_budget = max(1, _BLOCK_BYTES_TARGET // (tile_hw * itemsize))
    if rows <= rows_budget:
        tile_r = rows
    else:
        tile_r = max(align, (rows_budget // align) * align)
    return tile_r, tile_hw


def implicit_a(x, implicit, donate_x=False):
    """out = implicit + x, implicit shape (1, c, 1, 1), x shape (b, c, h, w)."""
    b, c, h, w = x.shape
    hw = h * w
    rows = b * c
    itemsize = jnp.dtype(x.dtype).itemsize
    align = _sublane_align(x.dtype)

    # Flatten batch into the channel axis (free view-style reshape for
    # contiguous NCHW) -> lane-dense layout + wide grid for megacore.
    x2 = x.reshape(rows, hw)
    # Per-row bias: row r = b_idx * c + c_idx gets implicit[c_idx].
    bias = jnp.tile(implicit.reshape(1, c), (b, 1)).reshape(rows, 1).astype(x.dtype)

    tile_r, tile_hw = _pick_tiles(rows, hw, itemsize, align)
    grid = (pl.cdiv(rows, tile_r), pl.cdiv(hw, tile_hw))  # spatial axis innermost

    out = pl.pallas_call(
        _implicit_a_kernel,
        out_shape=jax.ShapeDtypeStruct((rows, hw), x.dtype),
        grid_spec=pltpu.PrefetchScalarGridSpec(
            num_scalar_prefetch=0,
            grid=grid,
            in_specs=[
                # Bias block index depends only on the row tile -> it is not
                # re-DMA'd across the inner spatial sweep.
                pl.BlockSpec((tile_r, 1), lambda ri, wi: (ri, 0)),
                pl.BlockSpec((tile_r, tile_hw), lambda ri, wi: (ri, wi)),
            ],
            out_specs=pl.BlockSpec((tile_r, tile_hw), lambda ri, wi: (ri, wi)),
        ),
        compiler_params=pltpu.CompilerParams(
            dimension_semantics=("parallel", "parallel"),
            vmem_limit_bytes=_VMEM_LIMIT_BYTES),
        # Only alias x into the output when the caller actually donates x;
        # otherwise XLA would insert a defensive copy (extra HBM traffic).
        input_output_aliases=({1: 0} if donate_x else {}),
    )(bias, x2)

    return out.reshape(b, c, h, w)


def implicit_a_ref(x, implicit):
    # Pure-JAX reference mirroring the PyTorch forward.
    return implicit + x


if __name__ == "__main__":
    key = jax.random.PRNGKey(0)
    k_x, k_p = jax.random.split(key)

    b, c, h, w = 2, 4, 16, 16
    x = jax.random.normal(k_x, (b, c, h, w), dtype=jnp.float32)
    # nn.init.normal_(implicit, mean=0.0, std=0.02)
    implicit = 0.0 + 0.02 * jax.random.normal(k_p, (1, c, 1, 1),
                                              dtype=jnp.float32)

    out = implicit_a(x, implicit)
    out = jax.block_until_ready(out)

    ref = implicit_a_ref(x, implicit)
    assert out.shape == (b, c, h, w), out.shape
    assert out.dtype == x.dtype, out.dtype
    assert jnp.allclose(out, ref, atol=0.0, rtol=0.0), "mismatch vs reference"

    print("KERNEL_OK")
</pallas_src>

<mosaic_0001>
module attributes {stable_mosaic.version = 11 : i64} {
  func.func @_implicit_a_kernel(%arg0: i32, %arg1: i32, %arg2: memref<8x1xf32, #tpu.memory_space<vmem>>, %arg3: memref<8x256xf32, #tpu.memory_space<vmem>>, %arg4: memref<8x256xf32, #tpu.memory_space<vmem>>) attributes {dimension_semantics = [#tpu.dimension_semantics<parallel>, #tpu.dimension_semantics<parallel>], iteration_bounds = array<i64: 1, 1>, scalar_prefetch = 0 : i64, scratch_operands = 0 : i64, tpu.core_type = #tpu.core_type<tc>, window_params = [{transform_indices = @transform_0, window_bounds = array<i64: 8, 1>}, {transform_indices = @transform_1, window_bounds = array<i64: 8, 256>}, {transform_indices = @transform_2, window_bounds = array<i64: 8, 256>}]} {
    %c0 = arith.constant 0 : index
    %c0_0 = arith.constant 0 : index
    %0 = vector.load %arg3[%c0, %c0_0] : memref<8x256xf32, #tpu.memory_space<vmem>>, vector<8x256xf32>
    %c0_1 = arith.constant 0 : index
    %c0_2 = arith.constant 0 : index
    %1 = vector.load %arg2[%c0_1, %c0_2] : memref<8x1xf32, #tpu.memory_space<vmem>>, vector<8x1xf32>
    %2 = vector.broadcast %1 : vector<8x1xf32> to vector<8x256xf32>
    %3 = arith.addf %0, %2 : vector<8x256xf32>
    %c0_3 = arith.constant 0 : index
    %c0_4 = arith.constant 0 : index
    %4 = vector.load %arg4[%c0_3, %c0_4] : memref<8x256xf32, #tpu.memory_space<vmem>>, vector<8x256xf32>
    tpu.vector_store %arg4[%c0_3, %c0_4], %3 {strides = array<i32>} : memref<8x256xf32, #tpu.memory_space<vmem>>, vector<8x256xf32>,
    return
  }
  func.func @transform_0(%arg0: i32, %arg1: i32) -> (i32, i32) {
    %c0_i32 = arith.constant 0 : i32
    %c0_i32_0 = arith.constant 0 : i32
    return %arg0, %c0_i32 : i32, i32
  }
  func.func @transform_1(%arg0: i32, %arg1: i32) -> (i32, i32) {
    %c0_i32 = arith.constant 0 : i32
    return %arg0, %arg1 : i32, i32
  }
  func.func @transform_2(%arg0: i32, %arg1: i32) -> (i32, i32) {
    %c0_i32 = arith.constant 0 : i32
    return %arg0, %arg1 : i32, i32
  }
}

</mosaic_0001>

<llo_original>
// kernel: tpu_custom_call.1
$region0: #{tpu_custom_call.1}
  #allocation0 [shape = 'u32[]', space=smem, size = 0x4, offset = 0x4, fixed_abs, tag = 'smem constant byte address 0x4 - core index']
  #allocation1 [shape = 'u32[72,128]{1,0:T(1,128)}', space=vmem, size = 0x9000, scoped, tag = 'internal scratch']
  %s0 = inlined_call_operand.vmem [shape: f32[8,1], index: 0, kind: input, shape index: {}]
  %s1 = inlined_call_operand.hbm [shape: f32[8,256], index: 1, kind: input, shape index: {}]
  %s2 = inlined_call_operand.hbm [shape: f32[8,256], index: 2, kind: output, shape index: {}]
  %s3 = sld [smem:[#allocation0]]
  $region22: #{tpu_custom_call.1} parent=0
    _
  %s5 = ssub.s32 1, %s3
  %s6 = scalar_select 0, %s5, %s3
  $region1: #{tpu_custom_call.1} parent=0
    #allocation2 [shape = 'u8[8192]{0}', space=vmem, size = 0x2000, scoped, tag = 'input window, operand 1, single buffered']
    #allocation3 [shape = 's32[1]{0}', space=sflag, size = 0x4, scoped, tag = 'scoped memory for tpu_custom_call.1']
    #allocation4 [shape = 's32[1]{0}', space=sflag, size = 0x4, scoped, tag = 'scoped memory for tpu_custom_call.1']
    #allocation5 [shape = 'u8[8192]{0}', space=vmem, size = 0x2000, scoped, tag = 'output window, operand 0, single buffered']
    %7 = vsyncpa [#allocation3], 0
    %8 = vsyncpa [#allocation4], 0
    // Predicated region
    $region2: #{tpu_custom_call.1} parent=1 // pred_check
      _
    $region3: #{tpu_custom_call.1} parent=1 // pred_check_branch
      %10 = sbr.rel (0) target = $region5
    $region4: #{tpu_custom_call.1} parent=1 // pred_region
      _
    $region5: #{tpu_custom_call.1} parent=1 // pred_fallthru
      _
    // Predicated region
    $region6: #{tpu_custom_call.1} parent=1 // pred_check
      _
    $region7: #{tpu_custom_call.1} parent=1 // pred_check_branch
      %12 = sbr.rel (0) target = $region9
    $region8: #{tpu_custom_call.1} parent=1 // pred_region
      %14 = vsyncadd [#allocation3], 0
      %s16 = sshll.u32 %s1, 4
      %s17 = int_to_ptr.hbm [resolvable:$true] %s16
      %s18 = sshll.u32 [#allocation2], 4
      %s19 = int_to_ptr.vmem [resolvable:$true] %s18
      %21 = dma.hbm_to_vmem [thread:$0]  %s17, 256, %s19, [#allocation3]
    $region9: #{tpu_custom_call.1} parent=1 // pred_fallthru
      _
    // Predicated region
    $region10: #{tpu_custom_call.1} parent=1 // pred_check
      _
    $region11: #{tpu_custom_call.1} parent=1 // pred_check_branch
      %23 = sbr.rel (0) target = $region13
    $region12: #{tpu_custom_call.1} parent=1 // pred_region
      %25 = dma.done [#allocation3], 256
    $region13: #{tpu_custom_call.1} parent=1 // pred_fallthru
      _
    %v26 = vld [vmem:[#allocation2] sm:$0xff]
    %v27 = vld [vmem:[#allocation2 + $0x8] sm:$0xff]
    %v28 = vld [vmem:[%s0] sm:$0xff]
    %30 = vset.pattern.permute.xlu0 0
    %31 = vperm.xlu0 %30, %v28
    %v32 = vpop.permute.xlu0 %31
    %v34 = vadd.f32 %v26, %v32
    %v35 = vadd.f32 %v27, %v32
    %36 = vst [vmem:[#allocation5] sm:$0xff] %v34
    %37 = vst [vmem:[#allocation5 + $0x8] sm:$0xff] %v35
    // Predicated region
    $region14: #{tpu_custom_call.1} parent=1 // pred_check
      _
    $region15: #{tpu_custom_call.1} parent=1 // pred_check_branch
      %39 = sbr.rel (0) target = $region17
    $region16: #{tpu_custom_call.1} parent=1 // pred_region
      %41 = vsyncadd [#allocation4], 0
      %s43 = sshll.u32 [#allocation5], 4
      %s44 = int_to_ptr.vmem [resolvable:$true] %s43
      %s45 = sshll.u32 %s2, 4
      %s46 = int_to_ptr.hbm [resolvable:$true] %s45
      %48 = dma.vmem_to_hbm [thread:$0]  %s44, 256, %s46, [#allocation4]
    $region17: #{tpu_custom_call.1} parent=1 // pred_fallthru
      _
    // Predicated region
    $region18: #{tpu_custom_call.1} parent=1 // pred_check
      _
    $region19: #{tpu_custom_call.1} parent=1 // pred_check_branch
      %50 = sbr.rel (0) target = $region21
    $region20: #{tpu_custom_call.1} parent=1 // pred_region
      %52 = dma.done [#allocation4], 256
    $region21: #{tpu_custom_call.1} parent=1 // pred_fallthru
      _
    %53 = vsyncpa [#allocation3], 1
    %54 = vsyncpa [#allocation4], 1

</llo_original>
